<compile_context>
chip_gen: v7x
topology: tpu7x:2x2x1
jax: 0.10.0
libtpu: 0.0.40
codegen_flags: <defaults>
</compile_context>

<pallas_src>
import numpy as np
import jax
import jax.numpy as jnp
from jax import lax
from jax.experimental import pallas as pl
from jax.experimental.pallas import tpu as pltpu


def rnn_forward_kernel(x_ref, wih0_ref, whh0_ref, b0_ref, wlin_ref, blin_ref, out_ref):
    """Layer-0 RNN recurrence on the (already-selected) last batch row + linear head.

    x_ref:    (1, T, F) f32   only the last batch row (BlockSpec DMAs just this block)
    wih0_ref: (F, H)    bf16  layer-0 input weights, pre-transposed
    whh0_ref: (H, H)    bf16  layer-0 recurrent weights, pre-transposed
    b0_ref:   (1, H)    f32   combined layer-0 bias (b_ih + b_hh)
    wlin_ref: (1, H)    f32   linear head weight row
    blin_ref: (1, 1)    f32   linear head bias (SMEM scalar)
    out_ref:  (1, 1)    f32
    """
    T = x_ref.shape[1]
    H = whh0_ref.shape[0]

    # Hoisted, time-parallel input projection + bias: one bf16 MXU pass, f32 accumulate.
    x_last = x_ref[0].astype(jnp.bfloat16)                              # (T, F)
    xproj = (jnp.dot(x_last, wih0_ref[...], preferred_element_type=jnp.float32)
             + b0_ref[...])                                             # (T, H) f32

    whh0 = whh0_ref[...]                                                # (H, H) bf16, loaded once

    # Fully unrolled serial recurrence: one single-pass bf16 MXU dot + f32 add + tanh per step.
    h = jnp.zeros((1, H), jnp.float32)
    for t in range(T):                                                  # T is static (trace-time)
        hh = jnp.dot(h.astype(jnp.bfloat16), whh0,
                     preferred_element_type=jnp.float32)                # (1, H) f32
        h = jnp.tanh(xproj[t:t + 1, :] + hh)

    # Linear head: VPU multiply + lane (XLU) reduction; bias read as a scalar from SMEM.
    out_ref[...] = (jnp.sum(h * wlin_ref[...], axis=-1, keepdims=True)
                    + blin_ref[0, 0])


def prepare_params(params):
    """One-time weight-layout/dtype prep (parameter-load time, NOT the per-call path)."""
    H = params["whh0"].shape[0]
    # Layer-1 weights (wih1/whh1/bih1/bhh1) and the inter-layer dropout never influence the
    # returned value (the forward reads h_n[0] only) -> intentionally unused here.
    return {
        "wih0_bf16": jnp.asarray(params["wih0"], jnp.float32).T.astype(jnp.bfloat16),  # (F, H)
        "whh0_bf16": jnp.asarray(params["whh0"], jnp.float32).T.astype(jnp.bfloat16),  # (H, H)
        "b0": (params["bih0"] + params["bhh0"]).astype(jnp.float32).reshape(1, H),
        "wlin_row": jnp.asarray(params["wlin"], jnp.float32).reshape(1, H),             # (1, H)
        "blin": jnp.asarray(params["blin"], jnp.float32).reshape(1, 1),                 # (1, 1)
    }


def ts_model_rnn_forward(x, prep):
    """x: (B, T, F) batch-first, like the PyTorch module. Returns shape (1,)."""
    B, T, F = x.shape
    H = prep["whh0_bf16"].shape[0]
    if x.dtype != jnp.float32:            # no-op when already f32 (avoids a wrapper cast op)
        x = x.astype(jnp.float32)

    out = pl.pallas_call(
        rnn_forward_kernel,
        out_shape=jax.ShapeDtypeStruct((1, 1), jnp.float32),
        grid=(1,),
        in_specs=[
            # Only the last batch row of x is ever needed -> DMA just that (1, T, F) block.
            pl.BlockSpec((1, T, F), lambda i: (B - 1, 0, 0)),
            pl.BlockSpec((F, H), lambda i: (0, 0)),
            pl.BlockSpec((H, H), lambda i: (0, 0)),
            pl.BlockSpec((1, H), lambda i: (0, 0)),
            pl.BlockSpec((1, H), lambda i: (0, 0)),
            pl.BlockSpec(memory_space=pltpu.MemorySpace.SMEM),   # blin: scalar -> SMEM
        ],
        out_specs=pl.BlockSpec((1, 1), lambda i: (0, 0)),
        compiler_params=pltpu.CompilerParams(dimension_semantics=("arbitrary",)),
    )(x, prep["wih0_bf16"], prep["whh0_bf16"], prep["b0"], prep["wlin_row"], prep["blin"])
    return out.reshape(1)


def ref_forward(x, params):
    """Pure-JAX f32 reference reproducing the PyTorch module's literal forward semantics."""
    B, T, F = x.shape
    H = params["whh0"].shape[0]

    def run_layer(inp, wih, whh, bih, bhh):
        def step(h, x_t):
            h = jnp.tanh(x_t @ wih.T + bih + h @ whh.T + bhh)
            return h, h
        h_last, outs = lax.scan(step, jnp.zeros((B, H), jnp.float32),
                                jnp.transpose(inp, (1, 0, 2)))
        return jnp.transpose(outs, (1, 0, 2)), h_last

    _, h0_last = run_layer(x, params["wih0"], params["whh0"],
                           params["bih0"], params["bhh0"])
    lstm_out = h0_last[-1]                                            # (H,)
    return lstm_out @ params["wlin"].T + params["blin"]               # (1,)


def init_params(key, n_features, n_hidden):
    """Deterministic init mimicking PyTorch's U(-1/sqrt(H), 1/sqrt(H))."""
    ks = jax.random.split(key, 11)
    s = 1.0 / np.sqrt(n_hidden)
    u = lambda k, shape, sc: jax.random.uniform(k, shape, jnp.float32, -sc, sc)
    return {
        "wih0": u(ks[0], (n_hidden, n_features), s),
        "whh0": u(ks[1], (n_hidden, n_hidden), s),
        "bih0": u(ks[2], (n_hidden,), s),
        "bhh0": u(ks[3], (n_hidden,), s),
        "wih1": u(ks[4], (n_hidden, n_hidden), s),
        "whh1": u(ks[5], (n_hidden, n_hidden), s),
        "bih1": u(ks[6], (n_hidden,), s),
        "bhh1": u(ks[7], (n_hidden,), s),
        "wlin": u(ks[8], (1, n_hidden), s),
        "blin": u(ks[9], (1,), s),
    }


if __name__ == "__main__":
    B, T, F, H = 4, 8, 8, 32          # batch, seq, n_features, n_hidden (n_layers=2)
    key = jax.random.PRNGKey(0)
    kx, kp = jax.random.split(key)
    x = jax.random.normal(kx, (B, T, F), jnp.float32)
    params = init_params(kp, F, H)
    prep = prepare_params(params)      # one-time layout/dtype prep, off the per-call path

    fwd = jax.jit(ts_model_rnn_forward)
    y = jax.block_until_ready(fwd(x, prep))

    y_ref = ref_forward(x, params)
    assert y.shape == (1,), y.shape
    # bf16 MXU operands -> compare against the f32 reference with loosened tolerance.
    assert np.allclose(np.asarray(y), np.asarray(y_ref), rtol=5e-2, atol=5e-2), (y, y_ref)
    print("KERNEL_OK")
</pallas_src>

<mosaic_0001>
module attributes {stable_mosaic.version = 11 : i64} {
  func.func @rnn_forward_kernel(%arg0: i32, %arg1: memref<1x8x8xf32, #tpu.memory_space<vmem>>, %arg2: memref<8x32xbf16, #tpu.memory_space<vmem>>, %arg3: memref<32x32xbf16, #tpu.memory_space<vmem>>, %arg4: memref<1x32xf32, #tpu.memory_space<vmem>>, %arg5: memref<1x32xf32, #tpu.memory_space<vmem>>, %arg6: memref<1x1xf32, #tpu.memory_space<smem>>, %arg7: memref<1x1xf32, #tpu.memory_space<vmem>>) attributes {dimension_semantics = [#tpu.dimension_semantics<arbitrary>], iteration_bounds = array<i64: 1>, scalar_prefetch = 0 : i64, scratch_operands = 0 : i64, tpu.core_type = #tpu.core_type<tc>, window_params = [{transform_indices = @transform_0, window_bounds = array<i64: 1, 8, 8>}, {pipeline_mode = #tpu.pipeline_mode<synchronous>, transform_indices = @transform_1, window_bounds = array<i64: 8, 32>}, {pipeline_mode = #tpu.pipeline_mode<synchronous>, transform_indices = @transform_2, window_bounds = array<i64: 32, 32>}, {pipeline_mode = #tpu.pipeline_mode<synchronous>, transform_indices = @transform_3, window_bounds = array<i64: 1, 32>}, {pipeline_mode = #tpu.pipeline_mode<synchronous>, transform_indices = @transform_4, window_bounds = array<i64: 1, 32>}, {transform_indices = @transform_5, window_bounds = array<i64: 1, 1>}, {pipeline_mode = #tpu.pipeline_mode<synchronous>, transform_indices = @transform_6, window_bounds = array<i64: 1, 1>}]} {
    %c0 = arith.constant 0 : index
    %c0_0 = arith.constant 0 : index
    %c0_1 = arith.constant 0 : index
    %0 = vector.load %arg1[%c0, %c0_0, %c0_1] : memref<1x8x8xf32, #tpu.memory_space<vmem>>, vector<1x8x8xf32>
    %1 = vector.shape_cast %0 : vector<1x8x8xf32> to vector<8x8xf32>
    %2 = arith.truncf %1 : vector<8x8xf32> to vector<8x8xbf16>
    %c0_2 = arith.constant 0 : index
    %c0_3 = arith.constant 0 : index
    %3 = vector.load %arg2[%c0_2, %c0_3] : memref<8x32xbf16, #tpu.memory_space<vmem>>, vector<8x32xbf16>
    %cst = arith.constant dense<0.000000e+00> : vector<8x32xf32>
    %4 = tpu.matmul %2, %3, %cst {dimension_numbers = #tpu.dot_dimension_numbers<[1], [0], [0], [1], [0, 0, 1, 1], [], []>} : vector<8x8xbf16>, vector<8x32xbf16>, vector<8x32xf32> -> vector<8x32xf32>
    %c0_4 = arith.constant 0 : index
    %c0_5 = arith.constant 0 : index
    %5 = vector.load %arg4[%c0_4, %c0_5] : memref<1x32xf32, #tpu.memory_space<vmem>>, vector<1x32xf32>
    %6 = vector.broadcast %5 : vector<1x32xf32> to vector<8x32xf32>
    %7 = arith.addf %4, %6 : vector<8x32xf32>
    %c0_6 = arith.constant 0 : index
    %c0_7 = arith.constant 0 : index
    %8 = vector.load %arg3[%c0_6, %c0_7] : memref<32x32xbf16, #tpu.memory_space<vmem>>, vector<32x32xbf16>
    %cst_8 = arith.constant 0.000000e+00 : f32
    %9 = vector.broadcast %cst_8 : f32 to vector<1x32xf32>
    %10 = arith.truncf %9 : vector<1x32xf32> to vector<1x32xbf16>
    %cst_9 = arith.constant dense<0.000000e+00> : vector<1x32xf32>
    %11 = tpu.matmul %10, %8, %cst_9 {dimension_numbers = #tpu.dot_dimension_numbers<[1], [0], [0], [1], [0, 0, 1, 1], [], []>} : vector<1x32xbf16>, vector<32x32xbf16>, vector<1x32xf32> -> vector<1x32xf32>
    %12 = vector.extract_strided_slice %7 {offsets = [0, 0], sizes = [1, 32], strides = [1, 1]} : vector<8x32xf32> to vector<1x32xf32>
    %13 = arith.addf %12, %11 : vector<1x32xf32>
    %14 = math.tanh %13 : vector<1x32xf32>
    %15 = arith.truncf %14 : vector<1x32xf32> to vector<1x32xbf16>
    %cst_10 = arith.constant dense<0.000000e+00> : vector<1x32xf32>
    %16 = tpu.matmul %15, %8, %cst_10 {dimension_numbers = #tpu.dot_dimension_numbers<[1], [0], [0], [1], [0, 0, 1, 1], [], []>} : vector<1x32xbf16>, vector<32x32xbf16>, vector<1x32xf32> -> vector<1x32xf32>
    %17 = vector.extract_strided_slice %7 {offsets = [1, 0], sizes = [1, 32], strides = [1, 1]} : vector<8x32xf32> to vector<1x32xf32>
    %18 = arith.addf %17, %16 : vector<1x32xf32>
    %19 = math.tanh %18 : vector<1x32xf32>
    %20 = arith.truncf %19 : vector<1x32xf32> to vector<1x32xbf16>
    %cst_11 = arith.constant dense<0.000000e+00> : vector<1x32xf32>
    %21 = tpu.matmul %20, %8, %cst_11 {dimension_numbers = #tpu.dot_dimension_numbers<[1], [0], [0], [1], [0, 0, 1, 1], [], []>} : vector<1x32xbf16>, vector<32x32xbf16>, vector<1x32xf32> -> vector<1x32xf32>
    %22 = vector.extract_strided_slice %7 {offsets = [2, 0], sizes = [1, 32], strides = [1, 1]} : vector<8x32xf32> to vector<1x32xf32>
    %23 = arith.addf %22, %21 : vector<1x32xf32>
    %24 = math.tanh %23 : vector<1x32xf32>
    %25 = arith.truncf %24 : vector<1x32xf32> to vector<1x32xbf16>
    %cst_12 = arith.constant dense<0.000000e+00> : vector<1x32xf32>
    %26 = tpu.matmul %25, %8, %cst_12 {dimension_numbers = #tpu.dot_dimension_numbers<[1], [0], [0], [1], [0, 0, 1, 1], [], []>} : vector<1x32xbf16>, vector<32x32xbf16>, vector<1x32xf32> -> vector<1x32xf32>
    %27 = vector.extract_strided_slice %7 {offsets = [3, 0], sizes = [1, 32], strides = [1, 1]} : vector<8x32xf32> to vector<1x32xf32>
    %28 = arith.addf %27, %26 : vector<1x32xf32>
    %29 = math.tanh %28 : vector<1x32xf32>
    %30 = arith.truncf %29 : vector<1x32xf32> to vector<1x32xbf16>
    %cst_13 = arith.constant dense<0.000000e+00> : vector<1x32xf32>
    %31 = tpu.matmul %30, %8, %cst_13 {dimension_numbers = #tpu.dot_dimension_numbers<[1], [0], [0], [1], [0, 0, 1, 1], [], []>} : vector<1x32xbf16>, vector<32x32xbf16>, vector<1x32xf32> -> vector<1x32xf32>
    %32 = vector.extract_strided_slice %7 {offsets = [4, 0], sizes = [1, 32], strides = [1, 1]} : vector<8x32xf32> to vector<1x32xf32>
    %33 = arith.addf %32, %31 : vector<1x32xf32>
    %34 = math.tanh %33 : vector<1x32xf32>
    %35 = arith.truncf %34 : vector<1x32xf32> to vector<1x32xbf16>
    %cst_14 = arith.constant dense<0.000000e+00> : vector<1x32xf32>
    %36 = tpu.matmul %35, %8, %cst_14 {dimension_numbers = #tpu.dot_dimension_numbers<[1], [0], [0], [1], [0, 0, 1, 1], [], []>} : vector<1x32xbf16>, vector<32x32xbf16>, vector<1x32xf32> -> vector<1x32xf32>
    %37 = vector.extract_strided_slice %7 {offsets = [5, 0], sizes = [1, 32], strides = [1, 1]} : vector<8x32xf32> to vector<1x32xf32>
    %38 = arith.addf %37, %36 : vector<1x32xf32>
    %39 = math.tanh %38 : vector<1x32xf32>
    %40 = arith.truncf %39 : vector<1x32xf32> to vector<1x32xbf16>
    %cst_15 = arith.constant dense<0.000000e+00> : vector<1x32xf32>
    %41 = tpu.matmul %40, %8, %cst_15 {dimension_numbers = #tpu.dot_dimension_numbers<[1], [0], [0], [1], [0, 0, 1, 1], [], []>} : vector<1x32xbf16>, vector<32x32xbf16>, vector<1x32xf32> -> vector<1x32xf32>
    %42 = vector.extract_strided_slice %7 {offsets = [6, 0], sizes = [1, 32], strides = [1, 1]} : vector<8x32xf32> to vector<1x32xf32>
    %43 = arith.addf %42, %41 : vector<1x32xf32>
    %44 = math.tanh %43 : vector<1x32xf32>
    %45 = arith.truncf %44 : vector<1x32xf32> to vector<1x32xbf16>
    %cst_16 = arith.constant dense<0.000000e+00> : vector<1x32xf32>
    %46 = tpu.matmul %45, %8, %cst_16 {dimension_numbers = #tpu.dot_dimension_numbers<[1], [0], [0], [1], [0, 0, 1, 1], [], []>} : vector<1x32xbf16>, vector<32x32xbf16>, vector<1x32xf32> -> vector<1x32xf32>
    %47 = vector.extract_strided_slice %7 {offsets = [7, 0], sizes = [1, 32], strides = [1, 1]} : vector<8x32xf32> to vector<1x32xf32>
    %48 = arith.addf %47, %46 : vector<1x32xf32>
    %49 = math.tanh %48 : vector<1x32xf32>
    %c0_17 = arith.constant 0 : index
    %c0_18 = arith.constant 0 : index
    %50 = vector.load %arg5[%c0_17, %c0_18] : memref<1x32xf32, #tpu.memory_space<vmem>>, vector<1x32xf32>
    %51 = arith.mulf %49, %50 : vector<1x32xf32>
    %cst_19 = arith.constant dense<0.000000e+00> : vector<1xf32>
    %52 = vector.multi_reduction <add>, %51, %cst_19 [1] : vector<1x32xf32> to vector<1xf32>
    %53 = vector.shape_cast %52 : vector<1xf32> to vector<1x1xf32>
    %c0_20 = arith.constant 0 : index
    %c0_21 = arith.constant 0 : index
    %54 = memref.load %arg6[%c0_20, %c0_21] : memref<1x1xf32, #tpu.memory_space<smem>>
    %55 = vector.broadcast %54 : f32 to vector<1x1xf32>
    %56 = arith.addf %53, %55 : vector<1x1xf32>
    %c0_22 = arith.constant 0 : index
    %c0_23 = arith.constant 0 : index
    %57 = vector.load %arg7[%c0_22, %c0_23] : memref<1x1xf32, #tpu.memory_space<vmem>>, vector<1x1xf32>
    tpu.vector_store %arg7[%c0_22, %c0_23], %56 {strides = array<i32>} : memref<1x1xf32, #tpu.memory_space<vmem>>, vector<1x1xf32>,
    return
  }
  func.func @transform_0(%arg0: i32) -> (i32, i32, i32) {
    %c3_i32 = arith.constant 3 : i32
    %c0_i32 = arith.constant 0 : i32
    %c0_i32_0 = arith.constant 0 : i32
    %c0_i32_1 = arith.constant 0 : i32
    return %c3_i32, %c0_i32, %c0_i32_0 : i32, i32, i32
  }
  func.func @transform_1(%arg0: i32) -> (i32, i32) {
    %c0_i32 = arith.constant 0 : i32
    %c0_i32_0 = arith.constant 0 : i32
    %c0_i32_1 = arith.constant 0 : i32
    return %c0_i32, %c0_i32_0 : i32, i32
  }
  func.func @transform_2(%arg0: i32) -> (i32, i32) {
    %c0_i32 = arith.constant 0 : i32
    %c0_i32_0 = arith.constant 0 : i32
    %c0_i32_1 = arith.constant 0 : i32
    return %c0_i32, %c0_i32_0 : i32, i32
  }
  func.func @transform_3(%arg0: i32) -> (i32, i32) {
    %c0_i32 = arith.constant 0 : i32
    %c0_i32_0 = arith.constant 0 : i32
    %c0_i32_1 = arith.constant 0 : i32
    return %c0_i32, %c0_i32_0 : i32, i32
  }
  func.func @transform_4(%arg0: i32) -> (i32, i32) {
    %c0_i32 = arith.constant 0 : i32
    %c0_i32_0 = arith.constant 0 : i32
    %c0_i32_1 = arith.constant 0 : i32
    return %c0_i32, %c0_i32_0 : i32, i32
  }
  func.func @transform_5(%arg0: i32) -> (i32, i32) {
    %c0_i32 = arith.constant 0 : i32
    %c0_i32_0 = arith.constant 0 : i32
    %c0_i32_1 = arith.constant 0 : i32
    return %c0_i32, %c0_i32_0 : i32, i32
  }
  func.func @transform_6(%arg0: i32) -> (i32, i32) {
    %c0_i32 = arith.constant 0 : i32
    %c0_i32_0 = arith.constant 0 : i32
    %c0_i32_1 = arith.constant 0 : i32
    return %c0_i32, %c0_i32_0 : i32, i32
  }
}

</mosaic_0001>

<llo_original>
// kernel: ts_model_rnn_forward.1
$region0: #{ts_model_rnn_forward.1}
  #allocation0 [shape = 'u32[]', space=smem, size = 0x4, offset = 0x4, fixed_abs, tag = 'smem constant byte address 0x4 - core index']
  #allocation1 [shape = 'u32[144,128]{1,0:T(1,128)}', space=vmem, size = 0x12000, scoped, tag = 'internal scratch']
  #allocation2 [shape = 'f32[1,1]{1,0:T(1,128)S(6)}', space=smem, size = 0x200, scoped, tag = 'scoped memory for ts_model_rnn_forward.1']
  %s0 = inlined_call_operand.hbm [shape: f32[4,8,8], index: 0, kind: input, shape index: {}]
  %s1 = inlined_call_operand.vmem [shape: bf16[8,32], index: 1, kind: input, shape index: {}]
  %s2 = inlined_call_operand.hbm [shape: bf16[32,32], index: 2, kind: input, shape index: {}]
  %s3 = inlined_call_operand.vmem [shape: f32[1,32], index: 3, kind: input, shape index: {}]
  %s4 = inlined_call_operand.vmem [shape: f32[1,32], index: 4, kind: input, shape index: {}]
  %s5 = inlined_call_operand.<no memory space> [shape: f32[1,1], index: 5, kind: input, shape index: {}]
  %s6 = inlined_call_operand.hbm [shape: f32[1,1], index: 6, kind: output, shape index: {}]
  %s7 = sld [smem:[#allocation0]]
  $region42: #{ts_model_rnn_forward.1} parent=0
    _
  %s9 = ssub.s32 1, %s7
  %s10 = scalar_select 0, %s9, %s7
  %11 = sst [smem:[#allocation2]] %s5
  $region1: #{ts_model_rnn_forward.1} parent=0
    #allocation3 [shape = 'u8[4096]{0}', space=vmem, size = 0x1000, scoped, tag = 'input window, operand 0, single buffered']
    #allocation4 [shape = 's32[1]{0}', space=sflag, size = 0x4, scoped, tag = 'scoped memory for ts_model_rnn_forward.1']
    #allocation5 [shape = 's32[1]{0}', space=sflag, size = 0x4, scoped, tag = 'scoped memory for ts_model_rnn_forward.1']
    #allocation6 [shape = 'u8[8192]{0}', space=vmem, size = 0x2000, scoped, tag = 'input window, operand 2, single buffered']
    #allocation7 [shape = 's32[1]{0}', space=sflag, size = 0x4, scoped, tag = 'scoped memory for ts_model_rnn_forward.1']
    #allocation8 [shape = 'u8[512]{0}', space=vmem, size = 0x400, scoped, tag = 'output window, operand 0, single buffered']
    %12 = vsyncpa [#allocation4], 0
    %13 = vsyncpa [#allocation7], 0
    %14 = vsyncpa [#allocation5], 0
    // Predicated region
    $region2: #{ts_model_rnn_forward.1} parent=1 // pred_check
      _
    $region3: #{ts_model_rnn_forward.1} parent=1 // pred_check_branch
      %16 = sbr.rel (0) target = $region5
    $region4: #{ts_model_rnn_forward.1} parent=1 // pred_region
      %s18 = ssub.s32 128, 128
      %19 = vsyncadd [#allocation4], %s18
      %s20 = scalar_lea.hbm %s0, 384
      %s22 = sshll.u32 [#allocation3], 4
      %s23 = int_to_ptr.vmem [resolvable:$true] %s22
      %25 = dma.hbm_to_vmem [thread:$0]  %s20, 128, %s23, [#allocation4]
    $region5: #{ts_model_rnn_forward.1} parent=1 // pred_fallthru
      _
    // Predicated region
    $region6: #{ts_model_rnn_forward.1} parent=1 // pred_check
      _
    $region7: #{ts_model_rnn_forward.1} parent=1 // pred_check_branch
      %27 = sbr.rel (0) target = $region9
    $region8: #{ts_model_rnn_forward.1} parent=1 // pred_region
      _
    $region9: #{ts_model_rnn_forward.1} parent=1 // pred_fallthru
      _
    // Predicated region
    $region10: #{ts_model_rnn_forward.1} parent=1 // pred_check
      _
    $region11: #{ts_model_rnn_forward.1} parent=1 // pred_check_branch
      %29 = sbr.rel (0) target = $region13
    $region12: #{ts_model_rnn_forward.1} parent=1 // pred_region
      %s31 = ssub.s32 256, 256
      %32 = vsyncadd [#allocation7], %s31
      %s33 = sshll.u32 [#allocation6], 4
      %s34 = int_to_ptr.vmem [resolvable:$true] %s33
      %39 = dma.hbm_to_vmem [thread:$0]  %s2, 256, %s34, [#allocation7], 64, 64, 4
    $region13: #{ts_model_rnn_forward.1} parent=1 // pred_fallthru
      _
    // Predicated region
    $region14: #{ts_model_rnn_forward.1} parent=1 // pred_check
      _
    $region15: #{ts_model_rnn_forward.1} parent=1 // pred_check_branch
      %41 = sbr.rel (0) target = $region17
    $region16: #{ts_model_rnn_forward.1} parent=1 // pred_region
      _
    $region17: #{ts_model_rnn_forward.1} parent=1 // pred_fallthru
      _
    // Predicated region
    $region18: #{ts_model_rnn_forward.1} parent=1 // pred_check
      _
    $region19: #{ts_model_rnn_forward.1} parent=1 // pred_check_branch
      %43 = sbr.rel (0) target = $region21
    $region20: #{ts_model_rnn_forward.1} parent=1 // pred_region
      _
    $region21: #{ts_model_rnn_forward.1} parent=1 // pred_fallthru
      _
    // Predicated region
    $region22: #{ts_model_rnn_forward.1} parent=1 // pred_check
      _
    $region23: #{ts_model_rnn_forward.1} parent=1 // pred_check_branch
      %45 = sbr.rel (0) target = $region25
    $region24: #{ts_model_rnn_forward.1} parent=1 // pred_region
      _
    $region25: #{ts_model_rnn_forward.1} parent=1 // pred_fallthru
      _
    // Predicated region
    $region26: #{ts_model_rnn_forward.1} parent=1 // pred_check
      _
    $region27: #{ts_model_rnn_forward.1} parent=1 // pred_check_branch
      %47 = sbr.rel (0) target = $region29
    $region28: #{ts_model_rnn_forward.1} parent=1 // pred_region
      %48 = dma.done [#allocation4], 128
    $region29: #{ts_model_rnn_forward.1} parent=1 // pred_fallthru
      _
    // Predicated region
    $region30: #{ts_model_rnn_forward.1} parent=1 // pred_check
      _
    $region31: #{ts_model_rnn_forward.1} parent=1 // pred_check_branch
      %50 = sbr.rel (0) target = $region33
    $region32: #{ts_model_rnn_forward.1} parent=1 // pred_region
      %51 = dma.done [#allocation7], 256
    $region33: #{ts_model_rnn_forward.1} parent=1 // pred_fallthru
      _
    %v53 = vld [vmem:[#allocation3] sm:$0xff]
    %v54 = vpack.c.bf16 %v53, %v53
    %v55 = vld [vmem:[%s1] sm:$0xf]
    %v56 = vld [vmem:[%s3] sm:$0x1]
    %v58 = vlaneseq
    %v59 = vshrl.u32 %v58, 7
    %v60 = vsub.s32 0, %v59
    %v61 = vrot.slane %v56, %v60
    %vm63 = vcmask 64512
    %v65 = vsel %vm63, %v54, 0
    %vm67 = vcmask 1043456
    %v69 = vsel %vm67, %v55, 0
    %71 = vmatprep.subr.bf16.mxu0 0
    %72 = vmatpush1.bf16.msra.mxu0 %v69
    %73 = vmatprep.subr.bf16.mxu0 0
    %74 = vmatpush1.bf16.msra.mxu0 0
    %75 = vmatprep.subr.bf16.mxu0 0
    %76 = vmatpush1.bf16.msra.mxu0 0
    %77 = vmatprep.subr.bf16.mxu0 0
    %78 = vmatpush1.bf16.msra.mxu0 0
    %79 = vmatprep.subr.bf16.mxu0 0
    %80 = vmatpush1.bf16.msra.mxu0 0
    %81 = vmatprep.subr.bf16.mxu0 0
    %82 = vmatpush1.bf16.msra.mxu0 0
    %83 = vmatprep.subr.bf16.mxu0 0
    %84 = vmatpush1.bf16.msra.mxu0 0
    %85 = vmatprep.subr.bf16.mxu0 0
    %86 = vmatpush1.bf16.msra.mxu0 0
    %87 = vmatprep.subr.bf16.mxu0 0
    %88 = vmatpush1.bf16.msra.mxu0 0
    %89 = vmatprep.subr.bf16.mxu0 0
    %90 = vmatpush1.bf16.msra.mxu0 0
    %91 = vmatprep.subr.bf16.mxu0 0
    %92 = vmatpush1.bf16.msra.mxu0 0
    %93 = vmatprep.subr.bf16.mxu0 0
    %94 = vmatpush1.bf16.msra.mxu0 0
    %95 = vmatprep.subr.bf16.mxu0 0
    %96 = vmatpush1.bf16.msra.mxu0 0
    %97 = vmatprep.subr.bf16.mxu0 0
    %98 = vmatpush1.bf16.msra.mxu0 0
    %99 = vmatprep.subr.bf16.mxu0 0
    %100 = vmatpush1.bf16.msra.mxu0 0
    %101 = vmatprep.subr.bf16.mxu0 0
    %102 = vmatpush1.bf16.msra.mxu0 0
    %103 = vmatprep.mubr.bf16.mxu0 0
    %104 = vmatmul.mubr.bf16.gmra.mrb[0].mxu0 %v65
    %v105 = vpop.f32.mrb[0].mxu0
    %v106 = vadd.f32 %v61, %v105
    %v107 = vpop.f32.mrb[0].mxu0
    %v108 = vpop.f32.mrb[0].mxu0
    %v109 = vpop.f32.mrb[0].mxu0
    %110 = vdwg.mxu0
    %v111 = vld [vmem:[#allocation6] sm:$0xf]
    %v112 = vld [vmem:[#allocation6 + $0x4] sm:$0xf]
    %v113 = vld [vmem:[#allocation6 + $0x8] sm:$0xf]
    %v114 = vld [vmem:[#allocation6 + $0xc] sm:$0xf]
    %v119 = vunpack.c.l.b16 %v111
    %v120 = vunpack.c.l.b16 %v112
    %v121 = vunpack.c.l.b16 %v113
    %v122 = vunpack.c.l.b16 %v114
    %v123 = vpack.c.b16 %v120, %v119
    %v124 = vpack.c.b16 %v122, %v121
    %vm127 = vcmask 261120
    %v129 = vsel %vm127, 0, 0
    %131 = vmatprep.subr.bf16.mxu0 0
    %132 = vmatpush1.bf16.msra.mxu0 %v123
    %133 = vmatprep.subr.bf16.mxu0 0
    %134 = vmatpush1.bf16.msra.mxu0 %v124
    %135 = vmatprep.subr.bf16.mxu0 0
    %136 = vmatpush1.bf16.msra.mxu0 0
    %137 = vmatprep.subr.bf16.mxu0 0
    %138 = vmatpush1.bf16.msra.mxu0 0
    %139 = vmatprep.subr.bf16.mxu0 0
    %140 = vmatpush1.bf16.msra.mxu0 0
    %141 = vmatprep.subr.bf16.mxu0 0
    %142 = vmatpush1.bf16.msra.mxu0 0
    %143 = vmatprep.subr.bf16.mxu0 0
    %144 = vmatpush1.bf16.msra.mxu0 0
    %145 = vmatprep.subr.bf16.mxu0 0
    %146 = vmatpush1.bf16.msra.mxu0 0
    %147 = vmatprep.subr.bf16.mxu0 0
    %148 = vmatpush1.bf16.msra.mxu0 0
    %149 = vmatprep.subr.bf16.mxu0 0
    %150 = vmatpush1.bf16.msra.mxu0 0
    %151 = vmatprep.subr.bf16.mxu0 0
    %152 = vmatpush1.bf16.msra.mxu0 0
    %153 = vmatprep.subr.bf16.mxu0 0
    %154 = vmatpush1.bf16.msra.mxu0 0
    %155 = vmatprep.subr.bf16.mxu0 0
    %156 = vmatpush1.bf16.msra.mxu0 0
    %157 = vmatprep.subr.bf16.mxu0 0
    %158 = vmatpush1.bf16.msra.mxu0 0
    %159 = vmatprep.subr.bf16.mxu0 0
    %160 = vmatpush1.bf16.msra.mxu0 0
    %161 = vmatprep.subr.bf16.mxu0 0
    %162 = vmatpush1.bf16.msra.mxu0 0
    %163 = vmatprep.mubr.bf16.mxu0 0
    %164 = vmatmul.mubr.bf16.gmra.mrb[0].mxu0 %v129
    %v165 = vpop.f32.mrb[0].mxu0
    %v166 = vadd.f32 0.0, %v165
    %v167 = vpop.f32.mrb[0].mxu0
    %v168 = vpop.f32.mrb[0].mxu0
    %v169 = vpop.f32.mrb[0].mxu0
    %170 = vdwg.mxu0
    %v171 = vadd.f32 %v106, %v166
    %v172 = vtanh.pop %v171
    %v173 = vpack.c.bf16 %v172, %v172
    %v175 = vsel %vm127, %v173, 0
    %177 = vmatprep.subr.bf16.mxu0 0
    %178 = vmatpush1.bf16.msra.mxu0 %v123
    %179 = vmatprep.subr.bf16.mxu0 0
    %180 = vmatpush1.bf16.msra.mxu0 %v124
    %181 = vmatprep.subr.bf16.mxu0 0
    %182 = vmatpush1.bf16.msra.mxu0 0
    %183 = vmatprep.subr.bf16.mxu0 0
    %184 = vmatpush1.bf16.msra.mxu0 0
    %185 = vmatprep.subr.bf16.mxu0 0
    %186 = vmatpush1.bf16.msra.mxu0 0
    %187 = vmatprep.subr.bf16.mxu0 0
    %188 = vmatpush1.bf16.msra.mxu0 0
    %189 = vmatprep.subr.bf16.mxu0 0
    %190 = vmatpush1.bf16.msra.mxu0 0
    %191 = vmatprep.subr.bf16.mxu0 0
    %192 = vmatpush1.bf16.msra.mxu0 0
    %193 = vmatprep.subr.bf16.mxu0 0
    %194 = vmatpush1.bf16.msra.mxu0 0
    %195 = vmatprep.subr.bf16.mxu0 0
    %196 = vmatpush1.bf16.msra.mxu0 0
    %197 = vmatprep.subr.bf16.mxu0 0
    %198 = vmatpush1.bf16.msra.mxu0 0
    %199 = vmatprep.subr.bf16.mxu0 0
    %200 = vmatpush1.bf16.msra.mxu0 0
    %201 = vmatprep.subr.bf16.mxu0 0
    %202 = vmatpush1.bf16.msra.mxu0 0
    %203 = vmatprep.subr.bf16.mxu0 0
    %204 = vmatpush1.bf16.msra.mxu0 0
    %205 = vmatprep.subr.bf16.mxu0 0
    %206 = vmatpush1.bf16.msra.mxu0 0
    %207 = vmatprep.subr.bf16.mxu0 0
    %208 = vmatpush1.bf16.msra.mxu0 0
    %209 = vmatprep.mubr.bf16.mxu0 0
    %210 = vmatmul.mubr.bf16.gmra.mrb[0].mxu0 %v175
    %v211 = vpop.f32.mrb[0].mxu0
    %v212 = vadd.f32 0.0, %v211
    %v213 = vpop.f32.mrb[0].mxu0
    %v214 = vpop.f32.mrb[0].mxu0
    %v215 = vpop.f32.mrb[0].mxu0
    %216 = vdwg.mxu0
    %v218 = vrot.slane %v212, 7
    %v220 = vadd.f32 %v106, %v218
    %v221 = vtanh.pop %v220
    %v222 = vpack.c.bf16 %v221, %v221
    %v224 = vshrl.u32 %v222, 16
    %v227 = vsel %vm127, %v224, 0
    %229 = vmatprep.subr.bf16.mxu0 0
    %230 = vmatpush1.bf16.msra.mxu0 %v123
    %231 = vmatprep.subr.bf16.mxu0 0
    %232 = vmatpush1.bf16.msra.mxu0 %v124
    %233 = vmatprep.subr.bf16.mxu0 0
    %234 = vmatpush1.bf16.msra.mxu0 0
    %235 = vmatprep.subr.bf16.mxu0 0
    %236 = vmatpush1.bf16.msra.mxu0 0
    %237 = vmatprep.subr.bf16.mxu0 0
    %238 = vmatpush1.bf16.msra.mxu0 0
    %239 = vmatprep.subr.bf16.mxu0 0
    %240 = vmatpush1.bf16.msra.mxu0 0
    %241 = vmatprep.subr.bf16.mxu0 0
    %242 = vmatpush1.bf16.msra.mxu0 0
    %243 = vmatprep.subr.bf16.mxu0 0
    %244 = vmatpush1.bf16.msra.mxu0 0
    %245 = vmatprep.subr.bf16.mxu0 0
    %246 = vmatpush1.bf16.msra.mxu0 0
    %247 = vmatprep.subr.bf16.mxu0 0
    %248 = vmatpush1.bf16.msra.mxu0 0
    %249 = vmatprep.subr.bf16.mxu0 0
    %250 = vmatpush1.bf16.msra.mxu0 0
    %251 = vmatprep.subr.bf16.mxu0 0
    %252 = vmatpush1.bf16.msra.mxu0 0
    %253 = vmatprep.subr.bf16.mxu0 0
    %254 = vmatpush1.bf16.msra.mxu0 0
    %255 = vmatprep.subr.bf16.mxu0 0
    %256 = vmatpush1.bf16.msra.mxu0 0
    %257 = vmatprep.subr.bf16.mxu0 0
    %258 = vmatpush1.bf16.msra.mxu0 0
    %259 = vmatprep.subr.bf16.mxu0 0
    %260 = vmatpush1.bf16.msra.mxu0 0
    %261 = vmatprep.mubr.bf16.mxu0 0
    %262 = vmatmul.mubr.bf16.gmra.mrb[0].mxu0 %v227
    %v263 = vpop.f32.mrb[0].mxu0
    %v264 = vadd.f32 0.0, %v263
    %v265 = vpop.f32.mrb[0].mxu0
    %v266 = vpop.f32.mrb[0].mxu0
    %v267 = vpop.f32.mrb[0].mxu0
    %268 = vdwg.mxu0
    %v270 = vrot.slane %v264, 6
    %v272 = vadd.f32 %v106, %v270
    %v273 = vtanh.pop %v272
    %v274 = vpack.c.bf16 %v273, %v273
    %v276 = vrot.slane %v274, 1
    %v278 = vsel %vm127, %v276, 0
    %280 = vmatprep.subr.bf16.mxu0 0
    %281 = vmatpush1.bf16.msra.mxu0 %v123
    %282 = vmatprep.subr.bf16.mxu0 0
    %283 = vmatpush1.bf16.msra.mxu0 %v124
    %284 = vmatprep.subr.bf16.mxu0 0
    %285 = vmatpush1.bf16.msra.mxu0 0
    %286 = vmatprep.subr.bf16.mxu0 0
    %287 = vmatpush1.bf16.msra.mxu0 0
    %288 = vmatprep.subr.bf16.mxu0 0
    %289 = vmatpush1.bf16.msra.mxu0 0
    %290 = vmatprep.subr.bf16.mxu0 0
    %291 = vmatpush1.bf16.msra.mxu0 0
    %292 = vmatprep.subr.bf16.mxu0 0
    %293 = vmatpush1.bf16.msra.mxu0 0
    %294 = vmatprep.subr.bf16.mxu0 0
    %295 = vmatpush1.bf16.msra.mxu0 0
    %296 = vmatprep.subr.bf16.mxu0 0
    %297 = vmatpush1.bf16.msra.mxu0 0
    %298 = vmatprep.subr.bf16.mxu0 0
    %299 = vmatpush1.bf16.msra.mxu0 0
    %300 = vmatprep.subr.bf16.mxu0 0
    %301 = vmatpush1.bf16.msra.mxu0 0
    %302 = vmatprep.subr.bf16.mxu0 0
    %303 = vmatpush1.bf16.msra.mxu0 0
    %304 = vmatprep.subr.bf16.mxu0 0
    %305 = vmatpush1.bf16.msra.mxu0 0
    %306 = vmatprep.subr.bf16.mxu0 0
    %307 = vmatpush1.bf16.msra.mxu0 0
    %308 = vmatprep.subr.bf16.mxu0 0
    %309 = vmatpush1.bf16.msra.mxu0 0
    %310 = vmatprep.subr.bf16.mxu0 0
    %311 = vmatpush1.bf16.msra.mxu0 0
    %312 = vmatprep.mubr.bf16.mxu0 0
    %313 = vmatmul.mubr.bf16.gmra.mrb[0].mxu0 %v278
    %v314 = vpop.f32.mrb[0].mxu0
    %v315 = vadd.f32 0.0, %v314
    %v316 = vpop.f32.mrb[0].mxu0
    %v317 = vpop.f32.mrb[0].mxu0
    %v318 = vpop.f32.mrb[0].mxu0
    %319 = vdwg.mxu0
    %v321 = vrot.slane %v315, 5
    %v323 = vadd.f32 %v106, %v321
    %v324 = vtanh.pop %v323
    %v325 = vpack.c.bf16 %v324, %v324
    %v327 = vshrl.u32 %v325, 16
    %v329 = vrot.slane %v327, 1
    %v331 = vsel %vm127, %v329, 0
    %333 = vmatprep.subr.bf16.mxu0 0
    %334 = vmatpush1.bf16.msra.mxu0 %v123
    %335 = vmatprep.subr.bf16.mxu0 0
    %336 = vmatpush1.bf16.msra.mxu0 %v124
    %337 = vmatprep.subr.bf16.mxu0 0
    %338 = vmatpush1.bf16.msra.mxu0 0
    %339 = vmatprep.subr.bf16.mxu0 0
    %340 = vmatpush1.bf16.msra.mxu0 0
    %341 = vmatprep.subr.bf16.mxu0 0
    %342 = vmatpush1.bf16.msra.mxu0 0
    %343 = vmatprep.subr.bf16.mxu0 0
    %344 = vmatpush1.bf16.msra.mxu0 0
    %345 = vmatprep.subr.bf16.mxu0 0
    %346 = vmatpush1.bf16.msra.mxu0 0
    %347 = vmatprep.subr.bf16.mxu0 0
    %348 = vmatpush1.bf16.msra.mxu0 0
    %349 = vmatprep.subr.bf16.mxu0 0
    %350 = vmatpush1.bf16.msra.mxu0 0
    %351 = vmatprep.subr.bf16.mxu0 0
    %352 = vmatpush1.bf16.msra.mxu0 0
    %353 = vmatprep.subr.bf16.mxu0 0
    %354 = vmatpush1.bf16.msra.mxu0 0
    %355 = vmatprep.subr.bf16.mxu0 0
    %356 = vmatpush1.bf16.msra.mxu0 0
    %357 = vmatprep.subr.bf16.mxu0 0
    %358 = vmatpush1.bf16.msra.mxu0 0
    %359 = vmatprep.subr.bf16.mxu0 0
    %360 = vmatpush1.bf16.msra.mxu0 0
    %361 = vmatprep.subr.bf16.mxu0 0
    %362 = vmatpush1.bf16.msra.mxu0 0
    %363 = vmatprep.subr.bf16.mxu0 0
    %364 = vmatpush1.bf16.msra.mxu0 0
    %365 = vmatprep.mubr.bf16.mxu0 0
    %366 = vmatmul.mubr.bf16.gmra.mrb[0].mxu0 %v331
    %v367 = vpop.f32.mrb[0].mxu0
    %v368 = vadd.f32 0.0, %v367
    %v369 = vpop.f32.mrb[0].mxu0
    %v370 = vpop.f32.mrb[0].mxu0
    %v371 = vpop.f32.mrb[0].mxu0
    %372 = vdwg.mxu0
    %v374 = vrot.slane %v368, 4
    %v376 = vadd.f32 %v106, %v374
    %v377 = vtanh.pop %v376
    %v378 = vpack.c.bf16 %v377, %v377
    %v380 = vrot.slane %v378, 2
    %v382 = vsel %vm127, %v380, 0
    %384 = vmatprep.subr.bf16.mxu0 0
    %385 = vmatpush1.bf16.msra.mxu0 %v123
    %386 = vmatprep.subr.bf16.mxu0 0
    %387 = vmatpush1.bf16.msra.mxu0 %v124
    %388 = vmatprep.subr.bf16.mxu0 0
    %389 = vmatpush1.bf16.msra.mxu0 0
    %390 = vmatprep.subr.bf16.mxu0 0
    %391 = vmatpush1.bf16.msra.mxu0 0
    %392 = vmatprep.subr.bf16.mxu0 0
    %393 = vmatpush1.bf16.msra.mxu0 0
    %394 = vmatprep.subr.bf16.mxu0 0
    %395 = vmatpush1.bf16.msra.mxu0 0
    %396 = vmatprep.subr.bf16.mxu0 0
    %397 = vmatpush1.bf16.msra.mxu0 0
    %398 = vmatprep.subr.bf16.mxu0 0
    %399 = vmatpush1.bf16.msra.mxu0 0
    %400 = vmatprep.subr.bf16.mxu0 0
    %401 = vmatpush1.bf16.msra.mxu0 0
    %402 = vmatprep.subr.bf16.mxu0 0
    %403 = vmatpush1.bf16.msra.mxu0 0
    %404 = vmatprep.subr.bf16.mxu0 0
    %405 = vmatpush1.bf16.msra.mxu0 0
    %406 = vmatprep.subr.bf16.mxu0 0
    %407 = vmatpush1.bf16.msra.mxu0 0
    %408 = vmatprep.subr.bf16.mxu0 0
    %409 = vmatpush1.bf16.msra.mxu0 0
    %410 = vmatprep.subr.bf16.mxu0 0
    %411 = vmatpush1.bf16.msra.mxu0 0
    %412 = vmatprep.subr.bf16.mxu0 0
    %413 = vmatpush1.bf16.msra.mxu0 0
    %414 = vmatprep.subr.bf16.mxu0 0
    %415 = vmatpush1.bf16.msra.mxu0 0
    %416 = vmatprep.mubr.bf16.mxu0 0
    %417 = vmatmul.mubr.bf16.gmra.mrb[0].mxu0 %v382
    %v418 = vpop.f32.mrb[0].mxu0
    %v419 = vadd.f32 0.0, %v418
    %v420 = vpop.f32.mrb[0].mxu0
    %v421 = vpop.f32.mrb[0].mxu0
    %v422 = vpop.f32.mrb[0].mxu0
    %423 = vdwg.mxu0
    %v425 = vrot.slane %v419, 3
    %v427 = vadd.f32 %v106, %v425
    %v428 = vtanh.pop %v427
    %v429 = vpack.c.bf16 %v428, %v428
    %v431 = vshrl.u32 %v429, 16
    %v433 = vrot.slane %v431, 2
    %v435 = vsel %vm127, %v433, 0
    %437 = vmatprep.subr.bf16.mxu0 0
    %438 = vmatpush1.bf16.msra.mxu0 %v123
    %439 = vmatprep.subr.bf16.mxu0 0
    %440 = vmatpush1.bf16.msra.mxu0 %v124
    %441 = vmatprep.subr.bf16.mxu0 0
    %442 = vmatpush1.bf16.msra.mxu0 0
    %443 = vmatprep.subr.bf16.mxu0 0
    %444 = vmatpush1.bf16.msra.mxu0 0
    %445 = vmatprep.subr.bf16.mxu0 0
    %446 = vmatpush1.bf16.msra.mxu0 0
    %447 = vmatprep.subr.bf16.mxu0 0
    %448 = vmatpush1.bf16.msra.mxu0 0
    %449 = vmatprep.subr.bf16.mxu0 0
    %450 = vmatpush1.bf16.msra.mxu0 0
    %451 = vmatprep.subr.bf16.mxu0 0
    %452 = vmatpush1.bf16.msra.mxu0 0
    %453 = vmatprep.subr.bf16.mxu0 0
    %454 = vmatpush1.bf16.msra.mxu0 0
    %455 = vmatprep.subr.bf16.mxu0 0
    %456 = vmatpush1.bf16.msra.mxu0 0
    %457 = vmatprep.subr.bf16.mxu0 0
    %458 = vmatpush1.bf16.msra.mxu0 0
    %459 = vmatprep.subr.bf16.mxu0 0
    %460 = vmatpush1.bf16.msra.mxu0 0
    %461 = vmatprep.subr.bf16.mxu0 0
    %462 = vmatpush1.bf16.msra.mxu0 0
    %463 = vmatprep.subr.bf16.mxu0 0
    %464 = vmatpush1.bf16.msra.mxu0 0
    %465 = vmatprep.subr.bf16.mxu0 0
    %466 = vmatpush1.bf16.msra.mxu0 0
    %467 = vmatprep.subr.bf16.mxu0 0
    %468 = vmatpush1.bf16.msra.mxu0 0
    %469 = vmatprep.mubr.bf16.mxu0 0
    %470 = vmatmul.mubr.bf16.gmra.mrb[0].mxu0 %v435
    %v471 = vpop.f32.mrb[0].mxu0
    %v472 = vadd.f32 0.0, %v471
    %v473 = vpop.f32.mrb[0].mxu0
    %v474 = vpop.f32.mrb[0].mxu0
    %v475 = vpop.f32.mrb[0].mxu0
    %476 = vdwg.mxu0
    %v478 = vrot.slane %v472, 2
    %v480 = vadd.f32 %v106, %v478
    %v481 = vtanh.pop %v480
    %v482 = vpack.c.bf16 %v481, %v481
    %v484 = vrot.slane %v482, 3
    %v486 = vsel %vm127, %v484, 0
    %488 = vmatprep.subr.bf16.mxu0 0
    %489 = vmatpush1.bf16.msra.mxu0 %v123
    %490 = vmatprep.subr.bf16.mxu0 0
    %491 = vmatpush1.bf16.msra.mxu0 %v124
    %492 = vmatprep.subr.bf16.mxu0 0
    %493 = vmatpush1.bf16.msra.mxu0 0
    %494 = vmatprep.subr.bf16.mxu0 0
    %495 = vmatpush1.bf16.msra.mxu0 0
    %496 = vmatprep.subr.bf16.mxu0 0
    %497 = vmatpush1.bf16.msra.mxu0 0
    %498 = vmatprep.subr.bf16.mxu0 0
    %499 = vmatpush1.bf16.msra.mxu0 0
    %500 = vmatprep.subr.bf16.mxu0 0
    %501 = vmatpush1.bf16.msra.mxu0 0
    %502 = vmatprep.subr.bf16.mxu0 0
    %503 = vmatpush1.bf16.msra.mxu0 0
    %504 = vmatprep.subr.bf16.mxu0 0
    %505 = vmatpush1.bf16.msra.mxu0 0
    %506 = vmatprep.subr.bf16.mxu0 0
    %507 = vmatpush1.bf16.msra.mxu0 0
    %508 = vmatprep.subr.bf16.mxu0 0
    %509 = vmatpush1.bf16.msra.mxu0 0
    %510 = vmatprep.subr.bf16.mxu0 0
    %511 = vmatpush1.bf16.msra.mxu0 0
    %512 = vmatprep.subr.bf16.mxu0 0
    %513 = vmatpush1.bf16.msra.mxu0 0
    %514 = vmatprep.subr.bf16.mxu0 0
    %515 = vmatpush1.bf16.msra.mxu0 0
    %516 = vmatprep.subr.bf16.mxu0 0
    %517 = vmatpush1.bf16.msra.mxu0 0
    %518 = vmatprep.subr.bf16.mxu0 0
    %519 = vmatpush1.bf16.msra.mxu0 0
    %520 = vmatprep.mubr.bf16.mxu0 0
    %521 = vmatmul.mubr.bf16.gmra.mrb[0].mxu0 %v486
    %v522 = vpop.f32.mrb[0].mxu0
    %v523 = vadd.f32 0.0, %v522
    %v524 = vpop.f32.mrb[0].mxu0
    %v525 = vpop.f32.mrb[0].mxu0
    %v526 = vpop.f32.mrb[0].mxu0
    %527 = vdwg.mxu0
    %v529 = vrot.slane %v523, 1
    %v531 = vadd.f32 %v106, %v529
    %v532 = vtanh.pop %v531
    %v533 = vld [vmem:[%s4] sm:$0x1]
    %v535 = vlaneseq
    %v536 = vshrl.u32 %v535, 7
    %v537 = vsub.s32 0, %v536
    %v538 = vrot.slane %v533, %v537
    %v540 = vmul.f32 %v532, %v538
    %vm541 = vcmask 261127
    %v542 = vsel %vm541, %v540, 0.0
    %543 = vadd.xlane.f32.xlu0 %v542
    %v544 = vpop.xlane.xlu0 %543
    %s545 = sld [smem:[#allocation2]]
    %v546 = vstv %s545
    %v547 = vadd.f32 %v544, %v546
    %vm548 = vcmask 7175
    %549 = vst.msk [vmem:[#allocation8 - $0x7] sm:$0x80] %vm548, %v547
    // Predicated region
    $region34: #{ts_model_rnn_forward.1} parent=1 // pred_check
      _
    $region35: #{ts_model_rnn_forward.1} parent=1 // pred_check_branch
      %551 = sbr.rel (0) target = $region37
    $region36: #{ts_model_rnn_forward.1} parent=1 // pred_region
      %s553 = ssub.s32 16, 16
      %554 = vsyncadd [#allocation5], %s553
      %s556 = sshll.u32 [#allocation8], 4
      %s557 = int_to_ptr.vmem [resolvable:$true] %s556
      %559 = dma.vmem_to_hbm [thread:$0]  %s557, 16, %s6, [#allocation5]
    $region37: #{ts_model_rnn_forward.1} parent=1 // pred_fallthru
      _
    // Predicated region
    $region38: #{ts_model_rnn_forward.1} parent=1 // pred_check
      _
    $region39: #{ts_model_rnn_forward.1} parent=1 // pred_check_branch
      %561 = sbr.rel (0) target = $region41
    $region40: #{ts_model_rnn_forward.1} parent=1 // pred_region
      %562 = dma.done [#allocation5], 16
    $region41: #{ts_model_rnn_forward.1} parent=1 // pred_fallthru
      _
    %563 = vsyncpa [#allocation4], 1
    %564 = vsyncpa [#allocation7], 1
    %565 = vsyncpa [#allocation5], 1

</llo_original>
